<compile_context>
chip_gen: v7x
topology: tpu7x:2x2x1
jax: 0.10.0
libtpu: 0.0.40
codegen_flags: <defaults>
</compile_context>

<pallas_src>
import functools

import jax
import jax.numpy as jnp
from jax.experimental import pallas as pl
from jax.experimental.pallas import tpu as pltpu


def _round_up(x, m):
    return ((x + m - 1) // m) * m


def _make_fused_mlp_kernel(n_layers):
    """Kernel body: y = relu(...relu(relu(x @ W0 + b0) @ W1 + b1)... @ Wn + bn).

    Ref order: x_ref, (w0, b0), (w1, b1), ..., o_ref.
    All weights/biases are full-size VMEM residents; only x / o are batch-tiled.
    """

    def kernel(*refs):
        x_ref = refs[0]
        o_ref = refs[-1]
        h = x_ref[...].astype(jnp.float32)
        for l in range(n_layers):
            w_ref = refs[1 + 2 * l]
            b_ref = refs[2 + 2 * l]
            # MXU matmul with f32 accumulate, then f32 epilogue (bias + ReLU).
            h = jnp.dot(h, w_ref[...], preferred_element_type=jnp.float32)
            h = jnp.maximum(h + b_ref[...], 0.0)
        o_ref[...] = h.astype(o_ref.dtype)

    return kernel


def prep_params(params, *, lane_pad_last=True):
    """One-time prep outside the hot path.

    params: list of (w, b) in PyTorch nn.Linear layout: w (D_out, D_in), b (D_out,).
    Returns (prepped, d_out_true) where prepped is a tuple of
    (w_t (D_in, D_out[_padded]), b (1, D_out[_padded])) pairs.
    """
    n = len(params)
    prepped = []
    d_out_true = int(params[-1][0].shape[0])
    for i, (w, b) in enumerate(params):
        w_t = jnp.asarray(w).T                     # (D_in, D_out) — transposed once here
        b2 = jnp.asarray(b).reshape(1, -1)
        if lane_pad_last and i == n - 1:
            d_out = w_t.shape[1]
            pad = (-d_out) % 128                   # lane-dense final store
            if pad:
                w_t = jnp.pad(w_t, ((0, 0), (0, pad)))
                b2 = jnp.pad(b2, ((0, 0), (0, pad)))
        prepped.append((w_t, b2))
    return tuple(prepped), d_out_true


@functools.partial(jax.jit, static_argnames=("d_out_true", "batch_tile"))
def mlp_forward(x, prepped_params, *, d_out_true, batch_tile=256):
    """Fused MLP forward: single pallas_call over batch tiles."""
    B, D0 = x.shape
    n_layers = len(prepped_params)
    D_last = prepped_params[-1][0].shape[1]

    # Batch tile: multiple of 8 (f32 sublane packing), capped at batch_tile.
    tb = min(batch_tile, _round_up(B, 8))
    Bp = _round_up(B, tb)
    x_p = jnp.pad(x, ((0, Bp - B), (0, 0))) if Bp != B else x

    in_specs = [pl.BlockSpec((tb, D0), lambda i: (i, 0))]          # x tile
    flat_inputs = [x_p]
    for (w_t, b2) in prepped_params:
        d_in, d_o = w_t.shape
        in_specs.append(pl.BlockSpec((d_in, d_o), lambda i: (0, 0)))  # full weight, VMEM-resident
        in_specs.append(pl.BlockSpec((1, d_o), lambda i: (0, 0)))     # bias row
        flat_inputs.extend([w_t, b2])

    out = pl.pallas_call(
        _make_fused_mlp_kernel(n_layers),
        out_shape=jax.ShapeDtypeStruct((Bp, D_last), x.dtype),
        grid_spec=pltpu.PrefetchScalarGridSpec(
            num_scalar_prefetch=0,
            grid=(Bp // tb,),
            in_specs=in_specs,
            out_specs=pl.BlockSpec((tb, D_last), lambda i: (i, 0)),
        ),
        compiler_params=pltpu.CompilerParams(
            dimension_semantics=("parallel",)),     # batch tiles shard across TCs (v7x)
    )(*flat_inputs)

    # Drop batch padding and lane padding of the final layer.
    return out[:B, :d_out_true]


def init_mlp_params(key, dims):
    """Deterministic init matching nn.Linear default: U(-1/sqrt(fan_in), 1/sqrt(fan_in))."""
    params = []
    for i in range(len(dims) - 1):
        d_in, d_out = dims[i], dims[i + 1]
        key, kw, kb = jax.random.split(key, 3)
        bound = 1.0 / jnp.sqrt(jnp.float32(d_in))
        w = jax.random.uniform(kw, (d_out, d_in), jnp.float32, -bound, bound)
        b = jax.random.uniform(kb, (d_out,), jnp.float32, -bound, bound)
        params.append((w, b))
    return params


def _reference(x, params):
    out = x
    for w, b in params:
        out = jnp.maximum(out @ w.T + b, 0.0)
    return out


if __name__ == "__main__":
    dims = (16, 32, 64, 8)

    key = jax.random.PRNGKey(0)
    key, kx1, kx2 = jax.random.split(key, 3)
    params = init_mlp_params(key, dims)
    prepped, d_out_true = prep_params(params)

    # Case 1: tile-aligned batch.
    batch = 8
    x = jax.random.normal(kx1, (batch, dims[0]), jnp.float32)
    out = jax.block_until_ready(mlp_forward(x, prepped, d_out_true=d_out_true))
    ref = _reference(x, params)
    assert out.shape == (batch, dims[-1])
    assert jnp.allclose(out, ref, atol=1e-5, rtol=1e-5), "mismatch vs reference (aligned batch)"

    # Case 2: ragged batch (exercises batch padding + slice path).
    batch2 = 13
    x2 = jax.random.normal(kx2, (batch2, dims[0]), jnp.float32)
    out2 = jax.block_until_ready(mlp_forward(x2, prepped, d_out_true=d_out_true))
    ref2 = _reference(x2, params)
    assert out2.shape == (batch2, dims[-1])
    assert jnp.allclose(out2, ref2, atol=1e-5, rtol=1e-5), "mismatch vs reference (ragged batch)"

    print("KERNEL_OK")
</pallas_src>

<mosaic_0001>
module attributes {stable_mosaic.version = 11 : i64} {
  func.func @kernel(%arg0: i32, %arg1: memref<8x16xf32, #tpu.memory_space<vmem>>, %arg2: memref<16x32xf32, #tpu.memory_space<vmem>>, %arg3: memref<1x32xf32, #tpu.memory_space<vmem>>, %arg4: memref<32x64xf32, #tpu.memory_space<vmem>>, %arg5: memref<1x64xf32, #tpu.memory_space<vmem>>, %arg6: memref<64x128xf32, #tpu.memory_space<vmem>>, %arg7: memref<1x128xf32, #tpu.memory_space<vmem>>, %arg8: memref<8x128xf32, #tpu.memory_space<vmem>>) attributes {dimension_semantics = [#tpu.dimension_semantics<parallel>], iteration_bounds = array<i64: 1>, scalar_prefetch = 0 : i64, scratch_operands = 0 : i64, tpu.core_type = #tpu.core_type<tc>, window_params = [{transform_indices = @transform_0, window_bounds = array<i64: 8, 16>}, {pipeline_mode = #tpu.pipeline_mode<synchronous>, transform_indices = @transform_1, window_bounds = array<i64: 16, 32>}, {pipeline_mode = #tpu.pipeline_mode<synchronous>, transform_indices = @transform_2, window_bounds = array<i64: 1, 32>}, {pipeline_mode = #tpu.pipeline_mode<synchronous>, transform_indices = @transform_3, window_bounds = array<i64: 32, 64>}, {pipeline_mode = #tpu.pipeline_mode<synchronous>, transform_indices = @transform_4, window_bounds = array<i64: 1, 64>}, {pipeline_mode = #tpu.pipeline_mode<synchronous>, transform_indices = @transform_5, window_bounds = array<i64: 64, 128>}, {pipeline_mode = #tpu.pipeline_mode<synchronous>, transform_indices = @transform_6, window_bounds = array<i64: 1, 128>}, {transform_indices = @transform_7, window_bounds = array<i64: 8, 128>}]} {
    %c0 = arith.constant 0 : index
    %c0_0 = arith.constant 0 : index
    %0 = vector.load %arg1[%c0, %c0_0] : memref<8x16xf32, #tpu.memory_space<vmem>>, vector<8x16xf32>
    %c0_1 = arith.constant 0 : index
    %c0_2 = arith.constant 0 : index
    %1 = vector.load %arg2[%c0_1, %c0_2] : memref<16x32xf32, #tpu.memory_space<vmem>>, vector<16x32xf32>
    %cst = arith.constant dense<0.000000e+00> : vector<8x32xf32>
    %2 = tpu.matmul %0, %1, %cst {dimension_numbers = #tpu.dot_dimension_numbers<[1], [0], [0], [1], [0, 0, 1, 1], [], []>} : vector<8x16xf32>, vector<16x32xf32>, vector<8x32xf32> -> vector<8x32xf32>
    %c0_3 = arith.constant 0 : index
    %c0_4 = arith.constant 0 : index
    %3 = vector.load %arg3[%c0_3, %c0_4] : memref<1x32xf32, #tpu.memory_space<vmem>>, vector<1x32xf32>
    %4 = vector.broadcast %3 : vector<1x32xf32> to vector<8x32xf32>
    %5 = arith.addf %2, %4 : vector<8x32xf32>
    %cst_5 = arith.constant 0.000000e+00 : f32
    %6 = vector.broadcast %cst_5 : f32 to vector<8x32xf32>
    %7 = arith.maximumf %5, %6 : vector<8x32xf32>
    %c0_6 = arith.constant 0 : index
    %c0_7 = arith.constant 0 : index
    %8 = vector.load %arg4[%c0_6, %c0_7] : memref<32x64xf32, #tpu.memory_space<vmem>>, vector<32x64xf32>
    %cst_8 = arith.constant dense<0.000000e+00> : vector<8x64xf32>
    %9 = tpu.matmul %7, %8, %cst_8 {dimension_numbers = #tpu.dot_dimension_numbers<[1], [0], [0], [1], [0, 0, 1, 1], [], []>} : vector<8x32xf32>, vector<32x64xf32>, vector<8x64xf32> -> vector<8x64xf32>
    %c0_9 = arith.constant 0 : index
    %c0_10 = arith.constant 0 : index
    %10 = vector.load %arg5[%c0_9, %c0_10] : memref<1x64xf32, #tpu.memory_space<vmem>>, vector<1x64xf32>
    %11 = vector.broadcast %10 : vector<1x64xf32> to vector<8x64xf32>
    %12 = arith.addf %9, %11 : vector<8x64xf32>
    %cst_11 = arith.constant 0.000000e+00 : f32
    %13 = vector.broadcast %cst_11 : f32 to vector<8x64xf32>
    %14 = arith.maximumf %12, %13 : vector<8x64xf32>
    %c0_12 = arith.constant 0 : index
    %c0_13 = arith.constant 0 : index
    %15 = vector.load %arg6[%c0_12, %c0_13] : memref<64x128xf32, #tpu.memory_space<vmem>>, vector<64x128xf32>
    %cst_14 = arith.constant dense<0.000000e+00> : vector<8x128xf32>
    %16 = tpu.matmul %14, %15, %cst_14 {dimension_numbers = #tpu.dot_dimension_numbers<[1], [0], [0], [1], [0, 0, 1, 1], [], []>} : vector<8x64xf32>, vector<64x128xf32>, vector<8x128xf32> -> vector<8x128xf32>
    %c0_15 = arith.constant 0 : index
    %c0_16 = arith.constant 0 : index
    %17 = vector.load %arg7[%c0_15, %c0_16] : memref<1x128xf32, #tpu.memory_space<vmem>>, vector<1x128xf32>
    %18 = vector.broadcast %17 : vector<1x128xf32> to vector<8x128xf32>
    %19 = arith.addf %16, %18 : vector<8x128xf32>
    %cst_17 = arith.constant 0.000000e+00 : f32
    %20 = vector.broadcast %cst_17 : f32 to vector<8x128xf32>
    %21 = arith.maximumf %19, %20 : vector<8x128xf32>
    %c0_18 = arith.constant 0 : index
    %c0_19 = arith.constant 0 : index
    %22 = vector.load %arg8[%c0_18, %c0_19] : memref<8x128xf32, #tpu.memory_space<vmem>>, vector<8x128xf32>
    tpu.vector_store %arg8[%c0_18, %c0_19], %21 {strides = array<i32>} : memref<8x128xf32, #tpu.memory_space<vmem>>, vector<8x128xf32>,
    return
  }
  func.func @transform_0(%arg0: i32) -> (i32, i32) {
    %c0_i32 = arith.constant 0 : i32
    %c0_i32_0 = arith.constant 0 : i32
    return %arg0, %c0_i32 : i32, i32
  }
  func.func @transform_1(%arg0: i32) -> (i32, i32) {
    %c0_i32 = arith.constant 0 : i32
    %c0_i32_0 = arith.constant 0 : i32
    %c0_i32_1 = arith.constant 0 : i32
    return %c0_i32, %c0_i32_0 : i32, i32
  }
  func.func @transform_2(%arg0: i32) -> (i32, i32) {
    %c0_i32 = arith.constant 0 : i32
    %c0_i32_0 = arith.constant 0 : i32
    %c0_i32_1 = arith.constant 0 : i32
    return %c0_i32, %c0_i32_0 : i32, i32
  }
  func.func @transform_3(%arg0: i32) -> (i32, i32) {
    %c0_i32 = arith.constant 0 : i32
    %c0_i32_0 = arith.constant 0 : i32
    %c0_i32_1 = arith.constant 0 : i32
    return %c0_i32, %c0_i32_0 : i32, i32
  }
  func.func @transform_4(%arg0: i32) -> (i32, i32) {
    %c0_i32 = arith.constant 0 : i32
    %c0_i32_0 = arith.constant 0 : i32
    %c0_i32_1 = arith.constant 0 : i32
    return %c0_i32, %c0_i32_0 : i32, i32
  }
  func.func @transform_5(%arg0: i32) -> (i32, i32) {
    %c0_i32 = arith.constant 0 : i32
    %c0_i32_0 = arith.constant 0 : i32
    %c0_i32_1 = arith.constant 0 : i32
    return %c0_i32, %c0_i32_0 : i32, i32
  }
  func.func @transform_6(%arg0: i32) -> (i32, i32) {
    %c0_i32 = arith.constant 0 : i32
    %c0_i32_0 = arith.constant 0 : i32
    %c0_i32_1 = arith.constant 0 : i32
    return %c0_i32, %c0_i32_0 : i32, i32
  }
  func.func @transform_7(%arg0: i32) -> (i32, i32) {
    %c0_i32 = arith.constant 0 : i32
    %c0_i32_0 = arith.constant 0 : i32
    return %arg0, %c0_i32 : i32, i32
  }
}

</mosaic_0001>

<llo_original>
// kernel: mlp_forward.1
$region0: #{mlp_forward.1}
  #allocation0 [shape = 'u32[]', space=smem, size = 0x4, offset = 0x4, fixed_abs, tag = 'smem constant byte address 0x4 - core index']
  #allocation1 [shape = 'u32[144,128]{1,0:T(1,128)}', space=vmem, size = 0x12000, scoped, tag = 'internal scratch']
  %s0 = inlined_call_operand.hbm [shape: f32[8,16], index: 0, kind: input, shape index: {}]
  %s1 = inlined_call_operand.hbm [shape: f32[16,32], index: 1, kind: input, shape index: {}]
  %s2 = inlined_call_operand.vmem [shape: f32[1,32], index: 2, kind: input, shape index: {}]
  %s3 = inlined_call_operand.hbm [shape: f32[32,64], index: 3, kind: input, shape index: {}]
  %s4 = inlined_call_operand.vmem [shape: f32[1,64], index: 4, kind: input, shape index: {}]
  %s5 = inlined_call_operand.hbm [shape: f32[64,128], index: 5, kind: input, shape index: {}]
  %s6 = inlined_call_operand.vmem [shape: f32[1,128], index: 6, kind: input, shape index: {}]
  %s7 = inlined_call_operand.hbm [shape: f32[8,128], index: 7, kind: output, shape index: {}]
  %s8 = sld [smem:[#allocation0]]
  $region54: #{mlp_forward.1} parent=0
    _
  %s10 = ssub.s32 1, %s8
  %s11 = scalar_select 0, %s10, %s8
  $region1: #{mlp_forward.1} parent=0
    #allocation2 [shape = 'u8[4096]{0}', space=vmem, size = 0x1000, scoped, tag = 'input window, operand 0, single buffered']
    #allocation3 [shape = 's32[1]{0}', space=sflag, size = 0x4, scoped, tag = 'scoped memory for mlp_forward.1']
    #allocation4 [shape = 's32[1]{0}', space=sflag, size = 0x4, scoped, tag = 'scoped memory for mlp_forward.1']
    #allocation5 [shape = 'u8[8192]{0}', space=vmem, size = 0x2000, scoped, tag = 'input window, operand 1, single buffered']
    #allocation6 [shape = 's32[1]{0}', space=sflag, size = 0x4, scoped, tag = 'scoped memory for mlp_forward.1']
    #allocation7 [shape = 'u8[16384]{0}', space=vmem, size = 0x4000, scoped, tag = 'input window, operand 3, single buffered']
    #allocation8 [shape = 'u8[32768]{0}', space=vmem, size = 0x8000, scoped, tag = 'input window, operand 5, single buffered']
    #allocation9 [shape = 's32[1]{0}', space=sflag, size = 0x4, scoped, tag = 'scoped memory for mlp_forward.1']
    #allocation10 [shape = 'u8[4096]{0}', space=vmem, size = 0x1000, scoped, tag = 'output window, operand 0, single buffered']
    %12 = vsyncpa [#allocation3], 0
    %13 = vsyncpa [#allocation6], 0
    %14 = vsyncpa [#allocation9], 0
    %15 = vsyncpa [#allocation4], 0
    // Predicated region
    $region2: #{mlp_forward.1} parent=1 // pred_check
      _
    $region3: #{mlp_forward.1} parent=1 // pred_check_branch
      %17 = sbr.rel (0) target = $region5
    $region4: #{mlp_forward.1} parent=1 // pred_region
      %s19 = ssub.s32 128, 128
      %20 = vsyncadd [#allocation3], %s19
      %s22 = sshll.u32 [#allocation2], 4
      %s23 = int_to_ptr.vmem [resolvable:$true] %s22
      %25 = dma.hbm_to_vmem [thread:$0]  %s0, 128, %s23, [#allocation3]
    $region5: #{mlp_forward.1} parent=1 // pred_fallthru
      _
    // Predicated region
    $region6: #{mlp_forward.1} parent=1 // pred_check
      _
    $region7: #{mlp_forward.1} parent=1 // pred_check_branch
      %27 = sbr.rel (0) target = $region9
    $region8: #{mlp_forward.1} parent=1 // pred_region
      %s29 = ssub.s32 256, 256
      %30 = vsyncadd [#allocation6], %s29
      %s31 = sshll.u32 [#allocation5], 4
      %s32 = int_to_ptr.vmem [resolvable:$true] %s31
      %37 = dma.hbm_to_vmem [thread:$0]  %s1, 256, %s32, [#allocation6], 128, 128, 8
    $region9: #{mlp_forward.1} parent=1 // pred_fallthru
      _
    // Predicated region
    $region10: #{mlp_forward.1} parent=1 // pred_check
      _
    $region11: #{mlp_forward.1} parent=1 // pred_check_branch
      %39 = sbr.rel (0) target = $region13
    $region12: #{mlp_forward.1} parent=1 // pred_region
      _
    $region13: #{mlp_forward.1} parent=1 // pred_fallthru
      _
    // Predicated region
    $region14: #{mlp_forward.1} parent=1 // pred_check
      _
    $region15: #{mlp_forward.1} parent=1 // pred_check_branch
      %41 = sbr.rel (0) target = $region17
    $region16: #{mlp_forward.1} parent=1 // pred_region
      %s43 = ssub.s32 512, 512
      %44 = vsyncadd [#allocation6], %s43
      %s45 = sshll.u32 [#allocation7], 4
      %s46 = int_to_ptr.vmem [resolvable:$true] %s45
      %51 = dma.hbm_to_vmem [thread:$0]  %s3, 512, %s46, [#allocation6], 128, 128, 8
    $region17: #{mlp_forward.1} parent=1 // pred_fallthru
      _
    // Predicated region
    $region18: #{mlp_forward.1} parent=1 // pred_check
      _
    $region19: #{mlp_forward.1} parent=1 // pred_check_branch
      %53 = sbr.rel (0) target = $region21
    $region20: #{mlp_forward.1} parent=1 // pred_region
      _
    $region21: #{mlp_forward.1} parent=1 // pred_fallthru
      _
    // Predicated region
    $region22: #{mlp_forward.1} parent=1 // pred_check
      _
    $region23: #{mlp_forward.1} parent=1 // pred_check_branch
      %55 = sbr.rel (0) target = $region25
    $region24: #{mlp_forward.1} parent=1 // pred_region
      %s57 = ssub.s32 1024, 1024
      %58 = vsyncadd [#allocation9], %s57
      %s59 = sshll.u32 [#allocation8], 4
      %s60 = int_to_ptr.vmem [resolvable:$true] %s59
      %65 = dma.hbm_to_vmem [thread:$0]  %s5, 1024, %s60, [#allocation9], 128, 128, 8
    $region25: #{mlp_forward.1} parent=1 // pred_fallthru
      _
    // Predicated region
    $region26: #{mlp_forward.1} parent=1 // pred_check
      _
    $region27: #{mlp_forward.1} parent=1 // pred_check_branch
      %67 = sbr.rel (0) target = $region29
    $region28: #{mlp_forward.1} parent=1 // pred_region
      _
    $region29: #{mlp_forward.1} parent=1 // pred_fallthru
      _
    // Predicated region
    $region30: #{mlp_forward.1} parent=1 // pred_check
      _
    $region31: #{mlp_forward.1} parent=1 // pred_check_branch
      %69 = sbr.rel (0) target = $region33
    $region32: #{mlp_forward.1} parent=1 // pred_region
      %70 = dma.done [#allocation3], 128
    $region33: #{mlp_forward.1} parent=1 // pred_fallthru
      _
    // Predicated region
    $region34: #{mlp_forward.1} parent=1 // pred_check
      _
    $region35: #{mlp_forward.1} parent=1 // pred_check_branch
      %72 = sbr.rel (0) target = $region37
    $region36: #{mlp_forward.1} parent=1 // pred_region
      %73 = dma.done [#allocation6], 256
    $region37: #{mlp_forward.1} parent=1 // pred_fallthru
      _
    // Predicated region
    $region38: #{mlp_forward.1} parent=1 // pred_check
      _
    $region39: #{mlp_forward.1} parent=1 // pred_check_branch
      %75 = sbr.rel (0) target = $region41
    $region40: #{mlp_forward.1} parent=1 // pred_region
      %76 = dma.done [#allocation6], 512
    $region41: #{mlp_forward.1} parent=1 // pred_fallthru
      _
    // Predicated region
    $region42: #{mlp_forward.1} parent=1 // pred_check
      _
    $region43: #{mlp_forward.1} parent=1 // pred_check_branch
      %78 = sbr.rel (0) target = $region45
    $region44: #{mlp_forward.1} parent=1 // pred_region
      %79 = dma.done [#allocation9], 1024
    $region45: #{mlp_forward.1} parent=1 // pred_fallthru
      _
    %v80 = vld [vmem:[#allocation2] sm:$0xff]
    %v81 = vld [vmem:[#allocation5] sm:$0xff]
    %v82 = vld [vmem:[#allocation5 + $0x8] sm:$0xff]
    %v83 = vld [vmem:[%s2] sm:$0x1]
    %v85 = vlaneseq
    %v86 = vshrl.u32 %v85, 7
    %v87 = vsub.s32 0, %v86
    %v88 = vrot.slane %v83, %v87
    %vm90 = vcmask 130048
    %v92 = vsel %vm90, %v80, 0
    %94 = vmatprep.subr.mxu0 0.0
    %95 = vmatpush1.msra.mxu0 %v81
    %96 = vmatprep.subr.mxu0 0.0
    %97 = vmatpush1.msra.mxu0 %v82
    %98 = vmatprep.subr.mxu0 0.0
    %99 = vmatpush1.msra.mxu0 0.0
    %100 = vmatprep.subr.mxu0 0.0
    %101 = vmatpush1.msra.mxu0 0.0
    %102 = vmatprep.subr.mxu0 0.0
    %103 = vmatpush1.msra.mxu0 0.0
    %104 = vmatprep.subr.mxu0 0.0
    %105 = vmatpush1.msra.mxu0 0.0
    %106 = vmatprep.subr.mxu0 0.0
    %107 = vmatpush1.msra.mxu0 0.0
    %108 = vmatprep.subr.mxu0 0.0
    %109 = vmatpush1.msra.mxu0 0.0
    %110 = vmatprep.subr.mxu0 0.0
    %111 = vmatpush1.msra.mxu0 0.0
    %112 = vmatprep.subr.mxu0 0.0
    %113 = vmatpush1.msra.mxu0 0.0
    %114 = vmatprep.subr.mxu0 0.0
    %115 = vmatpush1.msra.mxu0 0.0
    %116 = vmatprep.subr.mxu0 0.0
    %117 = vmatpush1.msra.mxu0 0.0
    %118 = vmatprep.subr.mxu0 0.0
    %119 = vmatpush1.msra.mxu0 0.0
    %120 = vmatprep.subr.mxu0 0.0
    %121 = vmatpush1.msra.mxu0 0.0
    %122 = vmatprep.subr.mxu0 0.0
    %123 = vmatpush1.msra.mxu0 0.0
    %124 = vmatprep.subr.mxu0 0.0
    %125 = vmatpush1.msra.mxu0 0.0
    %126 = vmatprep.subr.mxu0 0.0
    %127 = vmatpush1.msra.mxu0 0.0
    %128 = vmatprep.subr.mxu0 0.0
    %129 = vmatpush1.msra.mxu0 0.0
    %130 = vmatprep.subr.mxu0 0.0
    %131 = vmatpush1.msra.mxu0 0.0
    %132 = vmatprep.subr.mxu0 0.0
    %133 = vmatpush1.msra.mxu0 0.0
    %134 = vmatprep.subr.mxu0 0.0
    %135 = vmatpush1.msra.mxu0 0.0
    %136 = vmatprep.subr.mxu0 0.0
    %137 = vmatpush1.msra.mxu0 0.0
    %138 = vmatprep.subr.mxu0 0.0
    %139 = vmatpush1.msra.mxu0 0.0
    %140 = vmatprep.subr.mxu0 0.0
    %141 = vmatpush1.msra.mxu0 0.0
    %142 = vmatprep.subr.mxu0 0.0
    %143 = vmatpush1.msra.mxu0 0.0
    %144 = vmatprep.subr.mxu0 0.0
    %145 = vmatpush1.msra.mxu0 0.0
    %146 = vmatprep.subr.mxu0 0.0
    %147 = vmatpush1.msra.mxu0 0.0
    %148 = vmatprep.subr.mxu0 0.0
    %149 = vmatpush1.msra.mxu0 0.0
    %150 = vmatprep.subr.mxu0 0.0
    %151 = vmatpush1.msra.mxu0 0.0
    %152 = vmatprep.subr.mxu0 0.0
    %153 = vmatpush1.msra.mxu0 0.0
    %154 = vmatprep.subr.mxu0 0.0
    %155 = vmatpush1.msra.mxu0 0.0
    %156 = vmatprep.subr.mxu0 0.0
    %157 = vmatpush1.msra.mxu0 0.0
    %158 = vmatprep.mubr.f32.mxu0 0.0
    %159 = vmatmul.mubr.f32.gmra.mrb[0].mxu0 %v92
    %v160 = vpop.f32.mrb[0].mxu0
    %v161 = vadd.f32 %v88, %v160
    %v162 = vpop.f32.mrb[0].mxu0
    %163 = vdwg.mxu0
    %v164 = vmax.f32 %v161, 0.0
    %v165 = vld [vmem:[#allocation7] sm:$0xff]
    %v166 = vld [vmem:[#allocation7 + $0x8] sm:$0xff]
    %v167 = vld [vmem:[#allocation7 + $0x10] sm:$0xff]
    %v168 = vld [vmem:[#allocation7 + $0x18] sm:$0xff]
    %v169 = vld [vmem:[%s4] sm:$0x1]
    %v171 = vlaneseq
    %v172 = vshrl.u32 %v171, 7
    %v173 = vsub.s32 0, %v172
    %v174 = vrot.slane %v169, %v173
    %vm176 = vcmask 261120
    %v178 = vsel %vm176, %v164, 0
    %180 = vmatprep.subr.mxu0 0.0
    %181 = vmatpush1.msra.mxu0 %v165
    %182 = vmatprep.subr.mxu0 0.0
    %183 = vmatpush1.msra.mxu0 %v166
    %184 = vmatprep.subr.mxu0 0.0
    %185 = vmatpush1.msra.mxu0 %v167
    %186 = vmatprep.subr.mxu0 0.0
    %187 = vmatpush1.msra.mxu0 %v168
    %188 = vmatprep.subr.mxu0 0.0
    %189 = vmatpush1.msra.mxu0 0.0
    %190 = vmatprep.subr.mxu0 0.0
    %191 = vmatpush1.msra.mxu0 0.0
    %192 = vmatprep.subr.mxu0 0.0
    %193 = vmatpush1.msra.mxu0 0.0
    %194 = vmatprep.subr.mxu0 0.0
    %195 = vmatpush1.msra.mxu0 0.0
    %196 = vmatprep.subr.mxu0 0.0
    %197 = vmatpush1.msra.mxu0 0.0
    %198 = vmatprep.subr.mxu0 0.0
    %199 = vmatpush1.msra.mxu0 0.0
    %200 = vmatprep.subr.mxu0 0.0
    %201 = vmatpush1.msra.mxu0 0.0
    %202 = vmatprep.subr.mxu0 0.0
    %203 = vmatpush1.msra.mxu0 0.0
    %204 = vmatprep.subr.mxu0 0.0
    %205 = vmatpush1.msra.mxu0 0.0
    %206 = vmatprep.subr.mxu0 0.0
    %207 = vmatpush1.msra.mxu0 0.0
    %208 = vmatprep.subr.mxu0 0.0
    %209 = vmatpush1.msra.mxu0 0.0
    %210 = vmatprep.subr.mxu0 0.0
    %211 = vmatpush1.msra.mxu0 0.0
    %212 = vmatprep.subr.mxu0 0.0
    %213 = vmatpush1.msra.mxu0 0.0
    %214 = vmatprep.subr.mxu0 0.0
    %215 = vmatpush1.msra.mxu0 0.0
    %216 = vmatprep.subr.mxu0 0.0
    %217 = vmatpush1.msra.mxu0 0.0
    %218 = vmatprep.subr.mxu0 0.0
    %219 = vmatpush1.msra.mxu0 0.0
    %220 = vmatprep.subr.mxu0 0.0
    %221 = vmatpush1.msra.mxu0 0.0
    %222 = vmatprep.subr.mxu0 0.0
    %223 = vmatpush1.msra.mxu0 0.0
    %224 = vmatprep.subr.mxu0 0.0
    %225 = vmatpush1.msra.mxu0 0.0
    %226 = vmatprep.subr.mxu0 0.0
    %227 = vmatpush1.msra.mxu0 0.0
    %228 = vmatprep.subr.mxu0 0.0
    %229 = vmatpush1.msra.mxu0 0.0
    %230 = vmatprep.subr.mxu0 0.0
    %231 = vmatpush1.msra.mxu0 0.0
    %232 = vmatprep.subr.mxu0 0.0
    %233 = vmatpush1.msra.mxu0 0.0
    %234 = vmatprep.subr.mxu0 0.0
    %235 = vmatpush1.msra.mxu0 0.0
    %236 = vmatprep.subr.mxu0 0.0
    %237 = vmatpush1.msra.mxu0 0.0
    %238 = vmatprep.subr.mxu0 0.0
    %239 = vmatpush1.msra.mxu0 0.0
    %240 = vmatprep.subr.mxu0 0.0
    %241 = vmatpush1.msra.mxu0 0.0
    %242 = vmatprep.subr.mxu0 0.0
    %243 = vmatpush1.msra.mxu0 0.0
    %244 = vmatprep.mubr.f32.mxu0 0.0
    %245 = vmatmul.mubr.f32.gmra.mrb[0].mxu0 %v178
    %v246 = vpop.f32.mrb[0].mxu0
    %v247 = vadd.f32 %v174, %v246
    %v248 = vpop.f32.mrb[0].mxu0
    %249 = vdwg.mxu0
    %v250 = vmax.f32 %v247, 0.0
    %v251 = vld [vmem:[#allocation8] sm:$0xff]
    %v252 = vld [vmem:[#allocation8 + $0x8] sm:$0xff]
    %v253 = vld [vmem:[#allocation8 + $0x10] sm:$0xff]
    %v254 = vld [vmem:[#allocation8 + $0x18] sm:$0xff]
    %v255 = vld [vmem:[#allocation8 + $0x20] sm:$0xff]
    %v256 = vld [vmem:[#allocation8 + $0x28] sm:$0xff]
    %v257 = vld [vmem:[#allocation8 + $0x30] sm:$0xff]
    %v258 = vld [vmem:[#allocation8 + $0x38] sm:$0xff]
    %v259 = vld [vmem:[%s6] sm:$0x1]
    %v261 = vlaneseq
    %v262 = vshrl.u32 %v261, 7
    %v263 = vsub.s32 0, %v262
    %v264 = vrot.slane %v259, %v263
    %vm266 = vcmask 523264
    %v268 = vsel %vm266, %v250, 0
    %270 = vmatprep.subr.mxu0 0.0
    %271 = vmatpush1.msra.mxu0 %v251
    %272 = vmatprep.subr.mxu0 0.0
    %273 = vmatpush1.msra.mxu0 %v252
    %274 = vmatprep.subr.mxu0 0.0
    %275 = vmatpush1.msra.mxu0 %v253
    %276 = vmatprep.subr.mxu0 0.0
    %277 = vmatpush1.msra.mxu0 %v254
    %278 = vmatprep.subr.mxu0 0.0
    %279 = vmatpush1.msra.mxu0 %v255
    %280 = vmatprep.subr.mxu0 0.0
    %281 = vmatpush1.msra.mxu0 %v256
    %282 = vmatprep.subr.mxu0 0.0
    %283 = vmatpush1.msra.mxu0 %v257
    %284 = vmatprep.subr.mxu0 0.0
    %285 = vmatpush1.msra.mxu0 %v258
    %286 = vmatprep.subr.mxu0 0.0
    %287 = vmatpush1.msra.mxu0 0.0
    %288 = vmatprep.subr.mxu0 0.0
    %289 = vmatpush1.msra.mxu0 0.0
    %290 = vmatprep.subr.mxu0 0.0
    %291 = vmatpush1.msra.mxu0 0.0
    %292 = vmatprep.subr.mxu0 0.0
    %293 = vmatpush1.msra.mxu0 0.0
    %294 = vmatprep.subr.mxu0 0.0
    %295 = vmatpush1.msra.mxu0 0.0
    %296 = vmatprep.subr.mxu0 0.0
    %297 = vmatpush1.msra.mxu0 0.0
    %298 = vmatprep.subr.mxu0 0.0
    %299 = vmatpush1.msra.mxu0 0.0
    %300 = vmatprep.subr.mxu0 0.0
    %301 = vmatpush1.msra.mxu0 0.0
    %302 = vmatprep.subr.mxu0 0.0
    %303 = vmatpush1.msra.mxu0 0.0
    %304 = vmatprep.subr.mxu0 0.0
    %305 = vmatpush1.msra.mxu0 0.0
    %306 = vmatprep.subr.mxu0 0.0
    %307 = vmatpush1.msra.mxu0 0.0
    %308 = vmatprep.subr.mxu0 0.0
    %309 = vmatpush1.msra.mxu0 0.0
    %310 = vmatprep.subr.mxu0 0.0
    %311 = vmatpush1.msra.mxu0 0.0
    %312 = vmatprep.subr.mxu0 0.0
    %313 = vmatpush1.msra.mxu0 0.0
    %314 = vmatprep.subr.mxu0 0.0
    %315 = vmatpush1.msra.mxu0 0.0
    %316 = vmatprep.subr.mxu0 0.0
    %317 = vmatpush1.msra.mxu0 0.0
    %318 = vmatprep.subr.mxu0 0.0
    %319 = vmatpush1.msra.mxu0 0.0
    %320 = vmatprep.subr.mxu0 0.0
    %321 = vmatpush1.msra.mxu0 0.0
    %322 = vmatprep.subr.mxu0 0.0
    %323 = vmatpush1.msra.mxu0 0.0
    %324 = vmatprep.subr.mxu0 0.0
    %325 = vmatpush1.msra.mxu0 0.0
    %326 = vmatprep.subr.mxu0 0.0
    %327 = vmatpush1.msra.mxu0 0.0
    %328 = vmatprep.subr.mxu0 0.0
    %329 = vmatpush1.msra.mxu0 0.0
    %330 = vmatprep.subr.mxu0 0.0
    %331 = vmatpush1.msra.mxu0 0.0
    %332 = vmatprep.subr.mxu0 0.0
    %333 = vmatpush1.msra.mxu0 0.0
    %334 = vmatprep.mubr.f32.mxu0 0.0
    %335 = vmatmul.mubr.f32.gmra.mrb[0].mxu0 %v268
    %v336 = vpop.f32.mrb[0].mxu0
    %v337 = vadd.f32 %v264, %v336
    %v338 = vpop.f32.mrb[0].mxu0
    %339 = vdwg.mxu0
    %v340 = vmax.f32 %v337, 0.0
    %341 = vst [vmem:[#allocation10] sm:$0xff] %v340
    // Predicated region
    $region46: #{mlp_forward.1} parent=1 // pred_check
      _
    $region47: #{mlp_forward.1} parent=1 // pred_check_branch
      %343 = sbr.rel (0) target = $region49
    $region48: #{mlp_forward.1} parent=1 // pred_region
      %s345 = ssub.s32 128, 128
      %346 = vsyncadd [#allocation4], %s345
      %s348 = sshll.u32 [#allocation10], 4
      %s349 = int_to_ptr.vmem [resolvable:$true] %s348
      %351 = dma.vmem_to_hbm [thread:$0]  %s349, 128, %s7, [#allocation4]
    $region49: #{mlp_forward.1} parent=1 // pred_fallthru
      _
    // Predicated region
    $region50: #{mlp_forward.1} parent=1 // pred_check
      _
    $region51: #{mlp_forward.1} parent=1 // pred_check_branch
      %353 = sbr.rel (0) target = $region53
    $region52: #{mlp_forward.1} parent=1 // pred_region
      %354 = dma.done [#allocation4], 128
    $region53: #{mlp_forward.1} parent=1 // pred_fallthru
      _
    %355 = vsyncpa [#allocation3], 1
    %356 = vsyncpa [#allocation6], 1
    %357 = vsyncpa [#allocation9], 1
    %358 = vsyncpa [#allocation4], 1

</llo_original>
